<compile_context>
chip_gen: v7x
topology: tpu7x:2x2x1
jax: 0.10.0
libtpu: 0.0.40
codegen_flags: <defaults>
</compile_context>

<pallas_src>
import functools

import jax
import jax.numpy as jnp
from jax.experimental import pallas as pl
from jax.experimental.pallas import tpu as pltpu


def _round_up(n, m):
    return ((n + m - 1) // m) * m


def _mlp_kernel(x_ref, w1_ref, w2_ref, out_ref, *, num_outputs, activation, compute_dtype):
    # x_ref: (TB, D_in)  w1_ref: (D_in, H)  w2_ref: (H, O_pad)  out_ref: (TB, O_pad)
    # All streamed/resident data already arrives in compute_dtype (cast done in the wrapper).
    x = x_ref[...]
    w1 = w1_ref[...]
    w2 = w2_ref[...]

    # lin1: x @ W1.T, fed as a clean (M,K)@(K,N) matmul (W1 pre-transposed in the wrapper).
    z1 = jnp.dot(x, w1, preferred_element_type=jnp.float32)

    if activation == "sigmoid":
        h = jax.nn.sigmoid(z1)
    elif activation == "tanh":
        h = jnp.tanh(z1)
    elif activation == "relu":
        h = jnp.maximum(z1, 0.0)
    elif activation == "identity":
        h = z1
    else:
        raise NotImplementedError(activation)

    # lin2: h @ W2.T with W2 zero-padded to a lane-dense (multiple of 128) output width.
    logits = jnp.dot(h.astype(compute_dtype), w2, preferred_element_type=jnp.float32)

    # Mask padded output lanes with a large finite negative so they contribute ~0 to softmax
    # (finite constant is NaN-proof even in degenerate configs).
    col = jax.lax.broadcasted_iota(jnp.int32, logits.shape, 1)
    logits = jnp.where(col < num_outputs, logits, jnp.float32(-1e30))

    # Numerically stable softmax over dim=1 (matches torch.nn.Softmax(dim=1)).
    # Exact divide: rows must sum to 1 to f32 rounding.
    m = jnp.max(logits, axis=1, keepdims=True)
    e = jnp.exp(logits - m)
    denom = jnp.sum(e, axis=1, keepdims=True)
    out_ref[...] = (e / denom).astype(out_ref.dtype)


def mlp_forward(x, w1, w2, *, block_b=512, activation="sigmoid",
                compute_dtype=jnp.float32, out_dtype=jnp.float32):
    """Forward pass of the MLP.

    x:  (B, ...) batch, flattened to (B, num_inputs) like torch's X.reshape(-1, num_inputs).
    w1: (num_hidden, num_inputs)   torch nn.Linear layout.
    w2: (num_outputs, num_hidden)  torch nn.Linear layout.
    compute_dtype: streamed/matmul input dtype (bf16 recommended on v6e/v7x; f32 accumulation
                   is kept either way). out_dtype: HBM writeback dtype of the padded output.
    Returns float32 (B, num_outputs) softmax probabilities.
    """
    num_hidden, num_inputs = w1.shape
    num_outputs = w2.shape[0]

    # Cast at the HBM boundary (wrapper), not inside the kernel.
    x2d = x.reshape(-1, num_inputs).astype(compute_dtype)
    B = x2d.shape[0]

    # Lane-dense output: pad output dim to a multiple of 128 with zero rows of W2,
    # then pre-transpose both weights ONCE so the kernel sees clean (K, N) operands.
    o_pad = _round_up(num_outputs, 128)
    w2p = jnp.zeros((o_pad, num_hidden), w2.dtype).at[:num_outputs, :].set(w2)
    w1t = w1.T.astype(compute_dtype)      # (num_inputs, num_hidden)
    w2t = w2p.T.astype(compute_dtype)     # (num_hidden, o_pad)

    # Batch tile: multiple of 16 sublanes (legal for both f32 (8,128) and bf16 (16,128) tiling).
    sub = 16
    b_ceil = _round_up(B, sub)
    tb = min(_round_up(block_b, sub), b_ceil)
    # Keep >=2 grid steps whenever the batch allows it so the "parallel" axis can be
    # sharded across both TensorCores on v7x (harmless on single-TC v5e/v6e).
    if b_ceil >= 2 * sub and b_ceil // tb < 2:
        tb = _round_up(pl.cdiv(b_ceil, 2), sub)
    b_pad = _round_up(B, tb)
    if b_pad != B:
        x2d = jnp.pad(x2d, ((0, b_pad - B), (0, 0)))
    grid = (b_pad // tb,)

    kernel = functools.partial(_mlp_kernel, num_outputs=num_outputs,
                               activation=activation, compute_dtype=compute_dtype)

    in_bpe = jnp.dtype(compute_dtype).itemsize
    out_bpe = jnp.dtype(out_dtype).itemsize
    cost = pl.CostEstimate(
        flops=2 * b_pad * (num_inputs * num_hidden + num_hidden * o_pad),
        transcendentals=b_pad * (num_hidden + o_pad),
        bytes_accessed=(in_bpe * (b_pad * num_inputs
                                  + num_inputs * num_hidden
                                  + num_hidden * o_pad)
                        + out_bpe * b_pad * o_pad),
    )

    # Right-sized VMEM limit: resident weights + double-buffered x/out tiles + f32 intermediates.
    vmem_need = (in_bpe * (num_inputs * num_hidden + num_hidden * o_pad)
                 + 2 * tb * (num_inputs * in_bpe + o_pad * out_bpe)
                 + 4 * tb * (2 * num_hidden + o_pad))
    vmem_limit = int(max(8 * 1024 * 1024, 2 * vmem_need))

    out = pl.pallas_call(
        kernel,
        out_shape=jax.ShapeDtypeStruct((b_pad, o_pad), out_dtype),
        grid_spec=pltpu.PrefetchScalarGridSpec(
            num_scalar_prefetch=0,
            grid=grid,
            in_specs=[
                pl.BlockSpec((tb, num_inputs), lambda i: (i, 0)),           # x: tiled on batch
                pl.BlockSpec((num_inputs, num_hidden), lambda i: (0, 0)),   # W1.T: VMEM-resident
                pl.BlockSpec((num_hidden, o_pad), lambda i: (0, 0)),        # W2.T: VMEM-resident
            ],
            out_specs=pl.BlockSpec((tb, o_pad), lambda i: (i, 0)),
        ),
        compiler_params=pltpu.CompilerParams(
            dimension_semantics=("parallel",),   # pure data-parallel batch axis (megacore on v7x)
            vmem_limit_bytes=vmem_limit,
        ),
        cost_estimate=cost,
    )(x2d, w1t, w2t)

    return out[:B, :num_outputs].astype(jnp.float32)


if __name__ == "__main__":
    # Small shapes consistent with the module: 1x16x16 images -> num_inputs=256,
    # num_hidden=128, num_outputs=10, activation='sigmoid', bias=False.
    B, C, Himg, Wimg = 40, 1, 16, 16
    num_inputs = C * Himg * Wimg
    num_hidden = 128
    num_outputs = 10

    key = jax.random.PRNGKey(0)
    kx, k1, k2 = jax.random.split(key, 3)

    x = jax.random.normal(kx, (B, C, Himg, Wimg), dtype=jnp.float32)

    # torch.nn.Linear default init: U(-1/sqrt(fan_in), 1/sqrt(fan_in)), torch (out, in) layout.
    bound1 = 1.0 / (num_inputs ** 0.5)
    bound2 = 1.0 / (num_hidden ** 0.5)
    w1 = jax.random.uniform(k1, (num_hidden, num_inputs), jnp.float32, -bound1, bound1)
    w2 = jax.random.uniform(k2, (num_outputs, num_hidden), jnp.float32, -bound2, bound2)

    # Default block_b=512: the B=40 batch still gets a 2-step grid (tile=32, pad to 64),
    # exercising pipelining + remainder padding + the 2-TC split path.
    y_pred = mlp_forward(x, w1, w2)
    y_pred = jax.block_until_ready(y_pred)

    # Pure-JAX reference.
    ref = jax.nn.softmax(jax.nn.sigmoid(x.reshape(-1, num_inputs) @ w1.T) @ w2.T, axis=1)
    assert y_pred.shape == (B, num_outputs)
    assert jnp.allclose(y_pred, ref, atol=2e-3, rtol=2e-3)
    assert jnp.allclose(jnp.sum(y_pred, axis=1), 1.0, atol=1e-3)

    # bf16 streamed inputs + bf16 writeback, f32 accumulation (recommended on v6e/v7x).
    y_bf16 = jax.block_until_ready(
        mlp_forward(x, w1, w2, compute_dtype=jnp.bfloat16, out_dtype=jnp.bfloat16))
    assert y_bf16.shape == (B, num_outputs)
    assert jnp.allclose(y_bf16, ref, atol=3e-2, rtol=3e-2)

    # TODO(synk): bias=True variant of the module is not implemented (module default is bias=False).
    print("KERNEL_OK")
</pallas_src>

<mosaic_0001>
module attributes {stable_mosaic.version = 11 : i64} {
  func.func @_mlp_kernel(%arg0: i32, %arg1: memref<32x256xf32, #tpu.memory_space<vmem>>, %arg2: memref<256x128xf32, #tpu.memory_space<vmem>>, %arg3: memref<128x128xf32, #tpu.memory_space<vmem>>, %arg4: memref<32x128xf32, #tpu.memory_space<vmem>>) attributes {dimension_semantics = [#tpu.dimension_semantics<parallel>], iteration_bounds = array<i64: 2>, scalar_prefetch = 0 : i64, scratch_operands = 0 : i64, tpu.core_type = #tpu.core_type<tc>, window_params = [{transform_indices = @transform_0, window_bounds = array<i64: 32, 256>}, {pipeline_mode = #tpu.pipeline_mode<synchronous>, transform_indices = @transform_1, window_bounds = array<i64: 256, 128>}, {pipeline_mode = #tpu.pipeline_mode<synchronous>, transform_indices = @transform_2, window_bounds = array<i64: 128, 128>}, {transform_indices = @transform_3, window_bounds = array<i64: 32, 128>}]} {
    %c0 = arith.constant 0 : index
    %c0_0 = arith.constant 0 : index
    %0 = vector.load %arg1[%c0, %c0_0] : memref<32x256xf32, #tpu.memory_space<vmem>>, vector<32x256xf32>
    %c0_1 = arith.constant 0 : index
    %c0_2 = arith.constant 0 : index
    %1 = vector.load %arg2[%c0_1, %c0_2] : memref<256x128xf32, #tpu.memory_space<vmem>>, vector<256x128xf32>
    %c0_3 = arith.constant 0 : index
    %c0_4 = arith.constant 0 : index
    %2 = vector.load %arg3[%c0_3, %c0_4] : memref<128x128xf32, #tpu.memory_space<vmem>>, vector<128x128xf32>
    %cst = arith.constant dense<0.000000e+00> : vector<32x128xf32>
    %3 = tpu.matmul %0, %1, %cst {dimension_numbers = #tpu.dot_dimension_numbers<[1], [0], [0], [1], [0, 0, 1, 1], [], []>} : vector<32x256xf32>, vector<256x128xf32>, vector<32x128xf32> -> vector<32x128xf32>
    %4 = arith.negf %3 : vector<32x128xf32>
    %5 = math.exp %4 : vector<32x128xf32>
    %cst_5 = arith.constant 1.000000e+00 : f32
    %6 = vector.broadcast %cst_5 : f32 to vector<32x128xf32>
    %7 = arith.addf %6, %5 : vector<32x128xf32>
    %8 = arith.divf %6, %7 : vector<32x128xf32>
    %cst_6 = arith.constant dense<0.000000e+00> : vector<32x128xf32>
    %9 = tpu.matmul %8, %2, %cst_6 {dimension_numbers = #tpu.dot_dimension_numbers<[1], [0], [0], [1], [0, 0, 1, 1], [], []>} : vector<32x128xf32>, vector<128x128xf32>, vector<32x128xf32> -> vector<32x128xf32>
    %10 = tpu.iota {dimensions = array<i32: 1>} : vector<32x128xi32>
    %c10_i32 = arith.constant 10 : i32
    %11 = vector.broadcast %c10_i32 : i32 to vector<32x128xi32>
    %12 = arith.cmpi slt, %10, %11 : vector<32x128xi32>
    %cst_7 = arith.constant -1.000000e+30 : f32
    %13 = vector.broadcast %cst_7 : f32 to vector<32x128xf32>
    %14 = arith.select %12, %9, %13 : vector<32x128xi1>, vector<32x128xf32>
    %cst_8 = arith.constant dense<0xFF800000> : vector<32xf32>
    %15 = vector.multi_reduction <maximumf>, %14, %cst_8 [1] : vector<32x128xf32> to vector<32xf32>
    %16 = vector.shape_cast %15 : vector<32xf32> to vector<32x1xf32>
    %17 = vector.broadcast %16 : vector<32x1xf32> to vector<32x128xf32>
    %18 = arith.subf %14, %17 : vector<32x128xf32>
    %19 = math.exp %18 : vector<32x128xf32>
    %cst_9 = arith.constant dense<0.000000e+00> : vector<32xf32>
    %20 = vector.multi_reduction <add>, %19, %cst_9 [1] : vector<32x128xf32> to vector<32xf32>
    %21 = vector.shape_cast %20 : vector<32xf32> to vector<32x1xf32>
    %22 = vector.broadcast %21 : vector<32x1xf32> to vector<32x128xf32>
    %23 = arith.divf %19, %22 : vector<32x128xf32>
    %c0_10 = arith.constant 0 : index
    %c0_11 = arith.constant 0 : index
    %24 = vector.load %arg4[%c0_10, %c0_11] : memref<32x128xf32, #tpu.memory_space<vmem>>, vector<32x128xf32>
    tpu.vector_store %arg4[%c0_10, %c0_11], %23 {strides = array<i32>} : memref<32x128xf32, #tpu.memory_space<vmem>>, vector<32x128xf32>,
    return
  }
  func.func @transform_0(%arg0: i32) -> (i32, i32) {
    %c0_i32 = arith.constant 0 : i32
    %c0_i32_0 = arith.constant 0 : i32
    return %arg0, %c0_i32 : i32, i32
  }
  func.func @transform_1(%arg0: i32) -> (i32, i32) {
    %c0_i32 = arith.constant 0 : i32
    %c0_i32_0 = arith.constant 0 : i32
    %c0_i32_1 = arith.constant 0 : i32
    return %c0_i32, %c0_i32_0 : i32, i32
  }
  func.func @transform_2(%arg0: i32) -> (i32, i32) {
    %c0_i32 = arith.constant 0 : i32
    %c0_i32_0 = arith.constant 0 : i32
    %c0_i32_1 = arith.constant 0 : i32
    return %c0_i32, %c0_i32_0 : i32, i32
  }
  func.func @transform_3(%arg0: i32) -> (i32, i32) {
    %c0_i32 = arith.constant 0 : i32
    %c0_i32_0 = arith.constant 0 : i32
    return %arg0, %c0_i32 : i32, i32
  }
}

</mosaic_0001>

<llo_original>
// kernel: tpu_custom_call.1
$region0: #{tpu_custom_call.1}
  #allocation0 [shape = 'u32[]', space=smem, size = 0x4, offset = 0x4, fixed_abs, tag = 'smem constant byte address 0x4 - core index']
  #allocation1 [shape = 'u32[144,128]{1,0:T(1,128)}', space=vmem, size = 0x12000, scoped, tag = 'internal scratch']
  %s0 = inlined_call_operand.hbm [shape: f32[64,256], index: 0, kind: input, shape index: {}]
  %s1 = inlined_call_operand.hbm [shape: f32[256,128], index: 1, kind: input, shape index: {}]
  %s2 = inlined_call_operand.hbm [shape: f32[128,128], index: 2, kind: input, shape index: {}]
  %s3 = inlined_call_operand.hbm [shape: f32[64,128], index: 3, kind: output, shape index: {}]
  %s4 = sld [smem:[#allocation0]]
  $region57: #{tpu_custom_call.1} parent=0
    _
  %s6 = ssub.s32 1, %s4
  %s7 = scalar_select 0, %s6, %s4
  $region1: #{tpu_custom_call.1} parent=0
    #allocation2 [shape = 'u8[65536]{0}', space=vmem, size = 0x10000, scoped, tag = 'input window, operand 0']
    #allocation3 [shape = 's32[2]{0}', space=sflag, size = 0x8, scoped, tag = 'scoped memory for tpu_custom_call.1']
    #allocation4 [shape = 's32[2]{0}', space=sflag, size = 0x8, scoped, tag = 'scoped memory for tpu_custom_call.1']
    #allocation5 [shape = 'u8[131072]{0}', space=vmem, size = 0x20000, scoped, tag = 'input window, operand 1, single buffered']
    #allocation6 [shape = 's32[1]{0}', space=sflag, size = 0x4, scoped, tag = 'scoped memory for tpu_custom_call.1']
    #allocation7 [shape = 'u8[65536]{0}', space=vmem, size = 0x10000, scoped, tag = 'input window, operand 2, single buffered']
    #allocation8 [shape = 'u8[32768]{0}', space=vmem, size = 0x8000, scoped, tag = 'output window, operand 0']
    %8 = vsyncpa [#allocation3], 0
    %s9 = scalar_lea.sflag [#allocation3], 1
    %10 = vsyncpa %s9, 0
    %11 = vsyncpa [#allocation6], 0
    %12 = vsyncpa [#allocation4], 0
    %s13 = scalar_lea.sflag [#allocation4], 1
    %14 = vsyncpa %s13, 0
    loop: start=0, step=1, limit=4
    $region2: #{tpu_custom_call.1} parent=1 // loop_pre_header
      _
    $region3: #{tpu_custom_call.1} parent=1 // loop_header
      %s16 = sphi 0, %s20
      %p17 = scmp.ge.s32.totalorder %s16, 4
      %s26 = sphi 0, %s28
      %s29 = sphi 0, %s26
      %s30 = sphi 0, %s29
      %s46 = sphi 0, %s30
      %s50 = sphi 0, %s50
      %s52 = sphi 0, %s50
      %s53 = sphi 0, %s52
      %s67 = sphi 0, %s53
      %s71 = sphi 0, %s71
      %s73 = sphi 0, %s71
      %s74 = sphi 0, %s73
      %s88 = sphi 0, %s74
      %s94 = sphi 0, %s96
      %s97 = sphi 0, %s94
      %s98 = sphi 0, %s97
      %s114 = sphi 0, %s98
    $region4: #{tpu_custom_call.1} parent=1 // loop_header_branch
      %19 = sbr.rel (%p17) target = $region8
    $region5: #{tpu_custom_call.1} parent=1 // loop_body
      %s21 = ssub.s32 %s16, 1
      %s22 = ssub.s32 %s16, 2
      %s23 = sadd.s32 %s16, 1
      %s24 = ssub.s32 %s16, %s23
      %p25 = scmp.eq.s32.totalorder %s24, 0
      %s27 = sadd.s32 %s26, 1
      %s28 = scalar_select %p25, %s26, %s27
      %p31 = pneg %p25
      %p32 = scmp.eq.s32.totalorder %s16, 1
      %p33 = por %p31, %p32
      %p34 = scmp.ne.s32.totalorder %s26, %s29
      %p35 = scmp.eq.s32.totalorder %s16, 0
      %p36 = por %p34, %p35
      %p37 = scmp.ne.s32.totalorder %s26, %s29
      %p38 = scmp.eq.s32.totalorder %s21, 1
      %p39 = por %p37, %p38
      %p40 = scmp.ne.s32.totalorder %s29, %s30
      %p41 = scmp.eq.s32.totalorder %s21, 0
      %p42 = por %p40, %p41
      %p43 = scmp.ne.s32.totalorder %s29, %s30
      %p44 = scmp.eq.s32.totalorder %s22, 1
      %p45 = por %p43, %p44
      %p47 = scmp.ne.s32.totalorder %s30, %s46
      %p48 = scmp.eq.s32.totalorder %s22, 0
      %p49 = por %p47, %p48
      %s51 = sadd.s32 %s50, 1
      %p54 = scmp.eq.s32.totalorder %s16, 1
      %p55 = scmp.ne.s32.totalorder %s50, %s52
      %p56 = scmp.eq.s32.totalorder %s16, 0
      %p57 = por %p55, %p56
      %p58 = scmp.ne.s32.totalorder %s50, %s52
      %p59 = scmp.eq.s32.totalorder %s21, 1
      %p60 = por %p58, %p59
      %p61 = scmp.ne.s32.totalorder %s52, %s53
      %p62 = scmp.eq.s32.totalorder %s21, 0
      %p63 = por %p61, %p62
      %p64 = scmp.ne.s32.totalorder %s52, %s53
      %p65 = scmp.eq.s32.totalorder %s22, 1
      %p66 = por %p64, %p65
      %p68 = scmp.ne.s32.totalorder %s53, %s67
      %p69 = scmp.eq.s32.totalorder %s22, 0
      %p70 = por %p68, %p69
      %s72 = sadd.s32 %s71, 1
      %p75 = scmp.eq.s32.totalorder %s16, 1
      %p76 = scmp.ne.s32.totalorder %s71, %s73
      %p77 = scmp.eq.s32.totalorder %s16, 0
      %p78 = por %p76, %p77
      %p79 = scmp.ne.s32.totalorder %s71, %s73
      %p80 = scmp.eq.s32.totalorder %s21, 1
      %p81 = por %p79, %p80
      %p82 = scmp.ne.s32.totalorder %s73, %s74
      %p83 = scmp.eq.s32.totalorder %s21, 0
      %p84 = por %p82, %p83
      %p85 = scmp.ne.s32.totalorder %s73, %s74
      %p86 = scmp.eq.s32.totalorder %s22, 1
      %p87 = por %p85, %p86
      %p89 = scmp.ne.s32.totalorder %s74, %s88
      %p90 = scmp.eq.s32.totalorder %s22, 0
      %p91 = por %p89, %p90
      %s92 = ssub.s32 %s16, %s23
      %p93 = scmp.eq.s32.totalorder %s92, 0
      %s95 = sadd.s32 %s94, 1
      %s96 = scalar_select %p93, %s94, %s95
      %p99 = pneg %p93
      %p100 = scmp.eq.s32.totalorder %s16, 1
      %p101 = por %p99, %p100
      %p102 = scmp.ne.s32.totalorder %s94, %s97
      %p103 = scmp.eq.s32.totalorder %s16, 0
      %p104 = por %p102, %p103
      %p105 = scmp.ne.s32.totalorder %s94, %s97
      %p106 = scmp.eq.s32.totalorder %s21, 1
      %p107 = por %p105, %p106
      %p108 = scmp.ne.s32.totalorder %s97, %s98
      %p109 = scmp.eq.s32.totalorder %s21, 0
      %p110 = por %p108, %p109
      %p111 = scmp.ne.s32.totalorder %s97, %s98
      %p112 = scmp.eq.s32.totalorder %s22, 1
      %p113 = por %p111, %p112
      %p115 = scmp.ne.s32.totalorder %s98, %s114
      %p116 = scmp.eq.s32.totalorder %s22, 0
      %p117 = por %p115, %p116
      %p118 = scmp.le.s32.totalorder 1, %s16
      %p119 = scmp.lt.s32.totalorder %s16, 3
      %p120 = pnand %p118, %p119
      %p121 = pneg %p120
      // Predicated region
      $region9: #{tpu_custom_call.1} parent=5 // pred_check
        _
      $region10: #{tpu_custom_call.1} parent=5 // pred_check_branch
        %123 = sbr.rel (%p120) target = $region12
      $region11: #{tpu_custom_call.1} parent=5 // pred_region
        %s124 = ssub.s32 %s16, 1
        // Predicated region
        $region13: #{tpu_custom_call.1} parent=11 // pred_check
          %p125 = pneg %p63
        $region14: #{tpu_custom_call.1} parent=11 // pred_check_branch
          %127 = sbr.rel (%p125) target = $region16
        $region15: #{tpu_custom_call.1} parent=11 // pred_region
          %s129 = ssub.s32 4096, 4096
          %130 = vsyncadd [#allocation6], %s129
          %s131 = sshll.u32 [#allocation5], 4
          %s132 = int_to_ptr.vmem [resolvable:$true] %s131
          %137 = dma.hbm_to_vmem [thread:$0]  %s1, 4096, %s132, [#allocation6], 128, 128, 8
        $region16: #{tpu_custom_call.1} parent=11 // pred_fallthru
          _
        // Predicated region
        $region17: #{tpu_custom_call.1} parent=11 // pred_check
          %p138 = pneg %p84
        $region18: #{tpu_custom_call.1} parent=11 // pred_check_branch
          %140 = sbr.rel (%p138) target = $region20
        $region19: #{tpu_custom_call.1} parent=11 // pred_region
          %s142 = ssub.s32 2048, 2048
          %143 = vsyncadd [#allocation6], %s142
          %s144 = sshll.u32 [#allocation7], 4
          %s145 = int_to_ptr.vmem [resolvable:$true] %s144
          %150 = dma.hbm_to_vmem [thread:$0]  %s2, 2048, %s145, [#allocation6], 128, 128, 8
        $region20: #{tpu_custom_call.1} parent=11 // pred_fallthru
          _
      $region12: #{tpu_custom_call.1} parent=5 // pred_fallthru
        _
      %p151 = scmp.lt.s32.totalorder %s16, 2
      // Predicated region
      $region21: #{tpu_custom_call.1} parent=5 // pred_check
        %p152 = pneg %p151
      $region22: #{tpu_custom_call.1} parent=5 // pred_check_branch
        %154 = sbr.rel (%p152) target = $region24
      $region23: #{tpu_custom_call.1} parent=5 // pred_region
        // Predicated region
        $region25: #{tpu_custom_call.1} parent=23 // pred_check
          %p155 = pneg %p36
        $region26: #{tpu_custom_call.1} parent=23 // pred_check_branch
          %157 = sbr.rel (%p155) target = $region28
        $region27: #{tpu_custom_call.1} parent=23 // pred_region
          %s158 = sand.u32 %s26, 1
          %s159 = scalar_lea.sflag [#allocation3], %s158
          %s160 = sand.u32 %s26, 1
          %s161 = smul.addr %s160, 64
          %s162 = scalar_lea.vmem [#allocation2], %s161
          %s163 = smul.u32 4, %s16
          %s165 = ssub.s32 1024, 1024
          %166 = vsyncadd %s159, %s165
          %s167 = smul.addr %s163, 2
          %s168 = smul.addr %s167, 128
          %s169 = scalar_lea.hbm %s0, %s168
          %s170 = sshll.u32 %s162, 4
          %s171 = int_to_ptr.vmem [resolvable:$true] %s170
          %176 = dma.hbm_to_vmem [thread:$0]  %s169, 1024, %s171, %s159, 256, 256, 16
        $region28: #{tpu_custom_call.1} parent=23 // pred_fallthru
          _
      $region24: #{tpu_custom_call.1} parent=5 // pred_fallthru
        _
      %p177 = scmp.le.s32.totalorder 1, %s16
      %p178 = scmp.lt.s32.totalorder %s16, 3
      %p179 = pnand %p177, %p178
      %p180 = pneg %p179
      // Predicated region
      $region29: #{tpu_custom_call.1} parent=5 // pred_check
        _
      $region30: #{tpu_custom_call.1} parent=5 // pred_check_branch
        %182 = sbr.rel (%p179) target = $region32
      $region31: #{tpu_custom_call.1} parent=5 // pred_region
        %s183 = ssub.s32 %s16, 1
        %s184 = sand.u32 %s29, 1
        %s185 = scalar_lea.sflag [#allocation3], %s184
        %s186 = sand.u32 %s29, 1
        %s187 = smul.addr %s186, 64
        %s188 = scalar_lea.vmem [#allocation2], %s187
        // Predicated region
        $region33: #{tpu_custom_call.1} parent=31 // pred_check
          %p189 = pneg %p42
        $region34: #{tpu_custom_call.1} parent=31 // pred_check_branch
          %191 = sbr.rel (%p189) target = $region36
        $region35: #{tpu_custom_call.1} parent=31 // pred_region
          %192 = dma.done %s185, 1024
        $region36: #{tpu_custom_call.1} parent=31 // pred_fallthru
          _
        // Predicated region
        $region37: #{tpu_custom_call.1} parent=31 // pred_check
          %p193 = pneg %p63
        $region38: #{tpu_custom_call.1} parent=31 // pred_check_branch
          %195 = sbr.rel (%p193) target = $region40
        $region39: #{tpu_custom_call.1} parent=31 // pred_region
          %196 = dma.done [#allocation6], 4096
        $region40: #{tpu_custom_call.1} parent=31 // pred_fallthru
          _
        // Predicated region
        $region41: #{tpu_custom_call.1} parent=31 // pred_check
          %p197 = pneg %p84
        $region42: #{tpu_custom_call.1} parent=31 // pred_check_branch
          %199 = sbr.rel (%p197) target = $region44
        $region43: #{tpu_custom_call.1} parent=31 // pred_region
          %200 = dma.done [#allocation6], 2048
        $region44: #{tpu_custom_call.1} parent=31 // pred_fallthru
          _
        %s201 = sand.u32 %s29, 1
        %s202 = scalar_lea.sflag [#allocation3], %s201
        %s203 = sand.u32 %s29, 1
        %s204 = smul.addr %s203, 64
        %s205 = scalar_lea.vmem [#allocation2], %s204
        %p206 = pneg %p42
        %p207 = pneg %p39
        %p208 = pneg %p63
        %p209 = pneg %p60
        %p210 = pneg %p84
        %p211 = pneg %p81
        %p212 = pneg %p110
        %p213 = pneg %p107
        %s214 = sand.u32 %s97, 1
        %s215 = scalar_lea.sflag [#allocation4], %s214
        %s216 = sand.u32 %s97, 1
        %s217 = smul.addr %s216, 32
        %s218 = scalar_lea.vmem [#allocation8], %s217
        %s219 = smul.u32 4, %s21
        %s220 = smul.u32 4, %s21
        %v221 = vld [vmem:[%s188] sm:$0xff]
        %v222 = vld [vmem:[%s188 + $0x8] sm:$0xff]
        %v223 = vld [vmem:[%s188 + $0x10] sm:$0xff]
        %v224 = vld [vmem:[%s188 + $0x18] sm:$0xff]
        %v225 = vld [vmem:[%s188 + $0x20] sm:$0xff]
        %v226 = vld [vmem:[%s188 + $0x28] sm:$0xff]
        %v227 = vld [vmem:[%s188 + $0x30] sm:$0xff]
        %v228 = vld [vmem:[%s188 + $0x38] sm:$0xff]
        %v229 = vld [vmem:[#allocation5] sm:$0xff]
        %v230 = vld [vmem:[#allocation5 + $0x8] sm:$0xff]
        %v231 = vld [vmem:[#allocation5 + $0x10] sm:$0xff]
        %v232 = vld [vmem:[#allocation5 + $0x18] sm:$0xff]
        %v233 = vld [vmem:[#allocation5 + $0x20] sm:$0xff]
        %v234 = vld [vmem:[#allocation5 + $0x28] sm:$0xff]
        %v235 = vld [vmem:[#allocation5 + $0x30] sm:$0xff]
        %v236 = vld [vmem:[#allocation5 + $0x38] sm:$0xff]
        %v237 = vld [vmem:[#allocation5 + $0x40] sm:$0xff]
        %v238 = vld [vmem:[#allocation5 + $0x48] sm:$0xff]
        %v239 = vld [vmem:[#allocation5 + $0x50] sm:$0xff]
        %v240 = vld [vmem:[#allocation5 + $0x58] sm:$0xff]
        %v241 = vld [vmem:[#allocation5 + $0x60] sm:$0xff]
        %v242 = vld [vmem:[#allocation5 + $0x68] sm:$0xff]
        %v243 = vld [vmem:[#allocation5 + $0x70] sm:$0xff]
        %v244 = vld [vmem:[#allocation5 + $0x78] sm:$0xff]
        %v245 = vld [vmem:[#allocation5 + $0x80] sm:$0xff]
        %v246 = vld [vmem:[#allocation5 + $0x88] sm:$0xff]
        %v247 = vld [vmem:[#allocation5 + $0x90] sm:$0xff]
        %v248 = vld [vmem:[#allocation5 + $0x98] sm:$0xff]
        %v249 = vld [vmem:[#allocation5 + $0xa0] sm:$0xff]
        %v250 = vld [vmem:[#allocation5 + $0xa8] sm:$0xff]
        %v251 = vld [vmem:[#allocation5 + $0xb0] sm:$0xff]
        %v252 = vld [vmem:[#allocation5 + $0xb8] sm:$0xff]
        %v253 = vld [vmem:[#allocation5 + $0xc0] sm:$0xff]
        %v254 = vld [vmem:[#allocation5 + $0xc8] sm:$0xff]
        %v255 = vld [vmem:[#allocation5 + $0xd0] sm:$0xff]
        %v256 = vld [vmem:[#allocation5 + $0xd8] sm:$0xff]
        %v257 = vld [vmem:[#allocation5 + $0xe0] sm:$0xff]
        %v258 = vld [vmem:[#allocation5 + $0xe8] sm:$0xff]
        %v259 = vld [vmem:[#allocation5 + $0xf0] sm:$0xff]
        %v260 = vld [vmem:[#allocation5 + $0xf8] sm:$0xff]
        %v261 = vld [vmem:[#allocation7] sm:$0xff]
        %v262 = vld [vmem:[#allocation7 + $0x8] sm:$0xff]
        %v263 = vld [vmem:[#allocation7 + $0x10] sm:$0xff]
        %v264 = vld [vmem:[#allocation7 + $0x18] sm:$0xff]
        %v265 = vld [vmem:[#allocation7 + $0x20] sm:$0xff]
        %v266 = vld [vmem:[#allocation7 + $0x28] sm:$0xff]
        %v267 = vld [vmem:[#allocation7 + $0x30] sm:$0xff]
        %v268 = vld [vmem:[#allocation7 + $0x38] sm:$0xff]
        %v269 = vld [vmem:[#allocation7 + $0x40] sm:$0xff]
        %v270 = vld [vmem:[#allocation7 + $0x48] sm:$0xff]
        %v271 = vld [vmem:[#allocation7 + $0x50] sm:$0xff]
        %v272 = vld [vmem:[#allocation7 + $0x58] sm:$0xff]
        %v273 = vld [vmem:[#allocation7 + $0x60] sm:$0xff]
        %v274 = vld [vmem:[#allocation7 + $0x68] sm:$0xff]
        %v275 = vld [vmem:[#allocation7 + $0x70] sm:$0xff]
        %v276 = vld [vmem:[#allocation7 + $0x78] sm:$0xff]
        %277 = vmatprep.subr.mxu0 0.0
        %278 = vmatpush1.msra.mxu0 %v229
        %279 = vmatprep.subr.mxu0 0.0
        %280 = vmatpush1.msra.mxu0 %v230
        %281 = vmatprep.subr.mxu0 0.0
        %282 = vmatpush1.msra.mxu0 %v231
        %283 = vmatprep.subr.mxu0 0.0
        %284 = vmatpush1.msra.mxu0 %v232
        %285 = vmatprep.subr.mxu0 0.0
        %286 = vmatpush1.msra.mxu0 %v233
        %287 = vmatprep.subr.mxu0 0.0
        %288 = vmatpush1.msra.mxu0 %v234
        %289 = vmatprep.subr.mxu0 0.0
        %290 = vmatpush1.msra.mxu0 %v235
        %291 = vmatprep.subr.mxu0 0.0
        %292 = vmatpush1.msra.mxu0 %v236
        %293 = vmatprep.subr.mxu0 0.0
        %294 = vmatpush1.msra.mxu0 %v237
        %295 = vmatprep.subr.mxu0 0.0
        %296 = vmatpush1.msra.mxu0 %v238
        %297 = vmatprep.subr.mxu0 0.0
        %298 = vmatpush1.msra.mxu0 %v239
        %299 = vmatprep.subr.mxu0 0.0
        %300 = vmatpush1.msra.mxu0 %v240
        %301 = vmatprep.subr.mxu0 0.0
        %302 = vmatpush1.msra.mxu0 %v241
        %303 = vmatprep.subr.mxu0 0.0
        %304 = vmatpush1.msra.mxu0 %v242
        %305 = vmatprep.subr.mxu0 0.0
        %306 = vmatpush1.msra.mxu0 %v243
        %307 = vmatprep.subr.mxu0 0.0
        %308 = vmatpush1.msra.mxu0 %v244
        %309 = vmatprep.subr.mxu0 0.0
        %310 = vmatpush1.msra.mxu0 %v245
        %311 = vmatprep.subr.mxu0 0.0
        %312 = vmatpush1.msra.mxu0 %v246
        %313 = vmatprep.subr.mxu0 0.0
        %314 = vmatpush1.msra.mxu0 %v247
        %315 = vmatprep.subr.mxu0 0.0
        %316 = vmatpush1.msra.mxu0 %v248
        %317 = vmatprep.subr.mxu0 0.0
        %318 = vmatpush1.msra.mxu0 %v249
        %319 = vmatprep.subr.mxu0 0.0
        %320 = vmatpush1.msra.mxu0 %v250
        %321 = vmatprep.subr.mxu0 0.0
        %322 = vmatpush1.msra.mxu0 %v251
        %323 = vmatprep.subr.mxu0 0.0
        %324 = vmatpush1.msra.mxu0 %v252
        %325 = vmatprep.subr.mxu0 0.0
        %326 = vmatpush1.msra.mxu0 %v253
        %327 = vmatprep.subr.mxu0 0.0
        %328 = vmatpush1.msra.mxu0 %v254
        %329 = vmatprep.subr.mxu0 0.0
        %330 = vmatpush1.msra.mxu0 %v255
        %331 = vmatprep.subr.mxu0 0.0
        %332 = vmatpush1.msra.mxu0 %v256
        %333 = vmatprep.subr.mxu0 0.0
        %334 = vmatpush1.msra.mxu0 %v257
        %335 = vmatprep.subr.mxu0 0.0
        %336 = vmatpush1.msra.mxu0 %v258
        %337 = vmatprep.subr.mxu0 0.0
        %338 = vmatpush1.msra.mxu0 %v259
        %339 = vmatprep.subr.mxu0 0.0
        %340 = vmatpush1.msra.mxu0 %v260
        %341 = vmatprep.mubr.f32.mxu0 %v222
        %342 = vmatmul.mubr.f32.gmra.mrb[0].mxu0 %v221
        %v343 = vpop.f32.mrb[0].mxu0
        %v344 = vadd.f32 0.0, %v343
        %v345 = vpop.f32.mrb[0].mxu0
        %346 = vmatprep.mubr.f32.mxu0 %v224
        %347 = vmatmul.mubr.f32.gmra.mrb[0].mxu0 %v223
        %v348 = vpop.f32.mrb[0].mxu0
        %v349 = vadd.f32 0.0, %v348
        %v350 = vpop.f32.mrb[0].mxu0
        %351 = vmatprep.mubr.f32.mxu0 %v226
        %352 = vmatmul.mubr.f32.gmra.mrb[0].mxu0 %v225
        %v353 = vpop.f32.mrb[0].mxu0
        %v354 = vadd.f32 0.0, %v353
        %v355 = vpop.f32.mrb[0].mxu0
        %356 = vmatprep.mubr.f32.mxu0 %v228
        %357 = vmatmul.mubr.f32.gmra.mrb[0].mxu0 %v227
        %v358 = vpop.f32.mrb[0].mxu0
        %v359 = vadd.f32 0.0, %v358
        %v360 = vpop.f32.mrb[0].mxu0
        %361 = vdwg.mxu0
        %v362 = vxor.u32 %v344, 2147483648
        %v363 = vxor.u32 %v349, 2147483648
        %v364 = vxor.u32 %v354, 2147483648
        %v365 = vxor.u32 %v359, 2147483648
        %v366 = vmul.f32 %v362, 1.442695
        %v367 = vpow.pop %v366
        %v368 = vmul.f32 %v363, 1.442695
        %v369 = vpow.pop %v368
        %v370 = vmul.f32 %v364, 1.442695
        %v371 = vpow.pop %v370
        %v372 = vmul.f32 %v365, 1.442695
        %v373 = vpow.pop %v372
        %v374 = vadd.f32 %v367, 1.0
        %v375 = vadd.f32 %v369, 1.0
        %v376 = vadd.f32 %v371, 1.0
        %v377 = vadd.f32 %v373, 1.0
        %v378 = vrcp.pop %v374
        %v379 = vmul.f32 1.0, %v378
        %v380 = vrcp.pop %v375
        %v381 = vmul.f32 1.0, %v380
        %v382 = vrcp.pop %v376
        %v383 = vmul.f32 1.0, %v382
        %v384 = vrcp.pop %v377
        %v385 = vmul.f32 1.0, %v384
        %386 = vmatprep.subr.mxu0 0.0
        %387 = vmatpush1.msra.mxu0 %v261
        %388 = vmatprep.subr.mxu0 0.0
        %389 = vmatpush1.msra.mxu0 %v262
        %390 = vmatprep.subr.mxu0 0.0
        %391 = vmatpush1.msra.mxu0 %v263
        %392 = vmatprep.subr.mxu0 0.0
        %393 = vmatpush1.msra.mxu0 %v264
        %394 = vmatprep.subr.mxu0 0.0
        %395 = vmatpush1.msra.mxu0 %v265
        %396 = vmatprep.subr.mxu0 0.0
        %397 = vmatpush1.msra.mxu0 %v266
        %398 = vmatprep.subr.mxu0 0.0
        %399 = vmatpush1.msra.mxu0 %v267
        %400 = vmatprep.subr.mxu0 0.0
        %401 = vmatpush1.msra.mxu0 %v268
        %402 = vmatprep.subr.mxu0 0.0
        %403 = vmatpush1.msra.mxu0 %v269
        %404 = vmatprep.subr.mxu0 0.0
        %405 = vmatpush1.msra.mxu0 %v270
        %406 = vmatprep.subr.mxu0 0.0
        %407 = vmatpush1.msra.mxu0 %v271
        %408 = vmatprep.subr.mxu0 0.0
        %409 = vmatpush1.msra.mxu0 %v272
        %410 = vmatprep.subr.mxu0 0.0
        %411 = vmatpush1.msra.mxu0 %v273
        %412 = vmatprep.subr.mxu0 0.0
        %413 = vmatpush1.msra.mxu0 %v274
        %414 = vmatprep.subr.mxu0 0.0
        %415 = vmatpush1.msra.mxu0 %v275
        %416 = vmatprep.subr.mxu0 0.0
        %417 = vmatpush1.msra.mxu0 %v276
        %418 = vmatprep.subr.mxu0 0.0
        %419 = vmatpush1.msra.mxu0 0.0
        %420 = vmatprep.subr.mxu0 0.0
        %421 = vmatpush1.msra.mxu0 0.0
        %422 = vmatprep.subr.mxu0 0.0
        %423 = vmatpush1.msra.mxu0 0.0
        %424 = vmatprep.subr.mxu0 0.0
        %425 = vmatpush1.msra.mxu0 0.0
        %426 = vmatprep.subr.mxu0 0.0
        %427 = vmatpush1.msra.mxu0 0.0
        %428 = vmatprep.subr.mxu0 0.0
        %429 = vmatpush1.msra.mxu0 0.0
        %430 = vmatprep.subr.mxu0 0.0
        %431 = vmatpush1.msra.mxu0 0.0
        %432 = vmatprep.subr.mxu0 0.0
        %433 = vmatpush1.msra.mxu0 0.0
        %434 = vmatprep.subr.mxu0 0.0
        %435 = vmatpush1.msra.mxu0 0.0
        %436 = vmatprep.subr.mxu0 0.0
        %437 = vmatpush1.msra.mxu0 0.0
        %438 = vmatprep.subr.mxu0 0.0
        %439 = vmatpush1.msra.mxu0 0.0
        %440 = vmatprep.subr.mxu0 0.0
        %441 = vmatpush1.msra.mxu0 0.0
        %442 = vmatprep.subr.mxu0 0.0
        %443 = vmatpush1.msra.mxu0 0.0
        %444 = vmatprep.subr.mxu0 0.0
        %445 = vmatpush1.msra.mxu0 0.0
        %446 = vmatprep.subr.mxu0 0.0
        %447 = vmatpush1.msra.mxu0 0.0
        %448 = vmatprep.subr.mxu0 0.0
        %449 = vmatpush1.msra.mxu0 0.0
        %450 = vmatprep.mubr.f32.mxu0 0.0
        %451 = vmatmul.mubr.f32.gmra.mrb[0].mxu0 %v379
        %v452 = vpop.f32.mrb[0].mxu0
        %v453 = vadd.f32 0.0, %v452
        %v454 = vpop.f32.mrb[0].mxu0
        %455 = vmatprep.mubr.f32.mxu0 0.0
        %456 = vmatmul.mubr.f32.gmra.mrb[0].mxu0 %v381
        %v457 = vpop.f32.mrb[0].mxu0
        %v458 = vadd.f32 0.0, %v457
        %v459 = vpop.f32.mrb[0].mxu0
        %460 = vmatprep.mubr.f32.mxu0 0.0
        %461 = vmatmul.mubr.f32.gmra.mrb[0].mxu0 %v383
        %v462 = vpop.f32.mrb[0].mxu0
        %v463 = vadd.f32 0.0, %v462
        %v464 = vpop.f32.mrb[0].mxu0
        %465 = vmatprep.mubr.f32.mxu0 0.0
        %466 = vmatmul.mubr.f32.gmra.mrb[0].mxu0 %v385
        %v467 = vpop.f32.mrb[0].mxu0
        %v468 = vadd.f32 0.0, %v467
        %v469 = vpop.f32.mrb[0].mxu0
        %470 = vdwg.mxu0
        %v471 = vlaneseq
        %v472 = vand.u32 %v471, 127
        %vm473 = vcmp.lt.s32.totalorder %v472, 10
        %v474 = vsel %vm473, %v453, -1e+30
        %v475 = vsel %vm473, %v458, -1e+30
        %v476 = vsel %vm473, %v463, -1e+30
        %v477 = vsel %vm473, %v468, -1e+30
        %478 = vmax.xlane.f32.xlu0 %v474
        %v479 = vpop.xlane.xlu0 %478
        %480 = vmax.xlane.f32.xlu0 %v475
        %v481 = vpop.xlane.xlu0 %480
        %482 = vmax.xlane.f32.xlu0 %v476
        %v483 = vpop.xlane.xlu0 %482
        %484 = vmax.xlane.f32.xlu0 %v477
        %v485 = vpop.xlane.xlu0 %484
        %v486 = vsub.f32 %v474, %v479
        %v487 = vsub.f32 %v475, %v481
        %v488 = vsub.f32 %v476, %v483
        %v489 = vsub.f32 %v477, %v485
        %v490 = vmul.f32 %v486, 1.442695
        %v491 = vpow.pop %v490
        %v492 = vmul.f32 %v487, 1.442695
        %v493 = vpow.pop %v492
        %v494 = vmul.f32 %v488, 1.442695
        %v495 = vpow.pop %v494
        %v496 = vmul.f32 %v489, 1.442695
        %v497 = vpow.pop %v496
        %498 = vadd.xlane.f32.xlu0 %v491
        %v499 = vpop.xlane.xlu0 %498
        %500 = vadd.xlane.f32.xlu0 %v493
        %v501 = vpop.xlane.xlu0 %500
        %502 = vadd.xlane.f32.xlu0 %v495
        %v503 = vpop.xlane.xlu0 %502
        %504 = vadd.xlane.f32.xlu0 %v497
        %v505 = vpop.xlane.xlu0 %504
        %v506 = vrcp.pop %v499
        %v507 = vmul.f32 %v491, %v506
        %v508 = vrcp.pop %v501
        %v509 = vmul.f32 %v493, %v508
        %v510 = vrcp.pop %v503
        %v511 = vmul.f32 %v495, %v510
        %v512 = vrcp.pop %v505
        %v513 = vmul.f32 %v497, %v512
        %514 = vst [vmem:[%s218] sm:$0xff] %v507
        %515 = vst [vmem:[%s218 + $0x8] sm:$0xff] %v509
        %516 = vst [vmem:[%s218 + $0x10] sm:$0xff] %v511
        %517 = vst [vmem:[%s218 + $0x18] sm:$0xff] %v513
        %s518 = sand.u32 %s97, 1
        %s519 = scalar_lea.sflag [#allocation4], %s518
        %s520 = sand.u32 %s97, 1
        %s521 = smul.addr %s520, 32
        %s522 = scalar_lea.vmem [#allocation8], %s521
        // Predicated region
        $region45: #{tpu_custom_call.1} parent=31 // pred_check
          %p523 = pneg %p107
        $region46: #{tpu_custom_call.1} parent=31 // pred_check_branch
          %525 = sbr.rel (%p523) target = $region48
        $region47: #{tpu_custom_call.1} parent=31 // pred_region
          %s526 = smul.u32 4, %s21
          %s528 = ssub.s32 512, 512
          %529 = vsyncadd %s519, %s528
          %s530 = smul.addr %s526, 128
          %s531 = scalar_lea.hbm %s3, %s530
          %s532 = sshll.u32 %s522, 4
          %s533 = int_to_ptr.vmem [resolvable:$true] %s532
          %538 = dma.vmem_to_hbm [thread:$0]  %s533, 512, %s531, %s519, 128, 128, 8
        $region48: #{tpu_custom_call.1} parent=31 // pred_fallthru
          _
      $region32: #{tpu_custom_call.1} parent=5 // pred_fallthru
        _
      %p539 = scmp.le.s32.totalorder 2, %s16
      // Predicated region
      $region49: #{tpu_custom_call.1} parent=5 // pred_check
        %p540 = pneg %p539
      $region50: #{tpu_custom_call.1} parent=5 // pred_check_branch
        %542 = sbr.rel (%p540) target = $region52
      $region51: #{tpu_custom_call.1} parent=5 // pred_region
        %s543 = ssub.s32 %s16, 2
        // Predicated region
        $region53: #{tpu_custom_call.1} parent=51 // pred_check
          %p544 = pneg %p113
        $region54: #{tpu_custom_call.1} parent=51 // pred_check_branch
          %546 = sbr.rel (%p544) target = $region56
        $region55: #{tpu_custom_call.1} parent=51 // pred_region
          %s547 = sand.u32 %s98, 1
          %s548 = scalar_lea.sflag [#allocation4], %s547
          %s549 = sand.u32 %s98, 1
          %s550 = smul.addr %s549, 32
          %s551 = scalar_lea.vmem [#allocation8], %s550
          %552 = dma.done %s548, 512
        $region56: #{tpu_custom_call.1} parent=51 // pred_fallthru
          _
      $region52: #{tpu_custom_call.1} parent=5 // pred_fallthru
        _
    $region6: #{tpu_custom_call.1} parent=1 // loop_footer
      %s20 = sadd.s32 1, %s16
    $region7: #{tpu_custom_call.1} parent=1 // loop_footer_branch
      %15 = sbr.rel target = $region3
    $region8: #{tpu_custom_call.1} parent=1 // loop_exit
      _
    %553 = vsyncpa [#allocation3], 1
    %s554 = scalar_lea.sflag [#allocation3], 1
    %555 = vsyncpa %s554, 1
    %556 = vsyncpa [#allocation6], 1
    %557 = vsyncpa [#allocation4], 1
    %s558 = scalar_lea.sflag [#allocation4], 1
    %559 = vsyncpa %s558, 1

</llo_original>
